<compile_context>
chip_gen: v5e
topology: v5e:2x2
jax: 0.10.0
libtpu: 0.0.40
codegen_flags: <defaults>
</compile_context>

<pallas_src>
import functools

import jax
import jax.numpy as jnp
from jax.experimental import pallas as pl
from jax.experimental.pallas import tpu as pltpu

NEG_SLOPE = 0.01  # nn.LeakyReLU() default negative_slope


def _conv_bn_lrelu_kernel(x_ref, w_ref, b_ref, o_ref, *, n_q, tl):
    # x_ref: (stride*C_in, TL + q_max) polyphase input tile (rows = r*C_in + c_in)
    # w_ref: (n_q, C_out, stride*C_in) BN-scale-folded weight, one slab per shift q
    # b_ref: (C_out, 1)                folded conv bias + BN shift
    # o_ref: (C_out, TL)               lane-dense NCW output tile
    acc = jnp.dot(w_ref[0], x_ref[:, 0:tl], preferred_element_type=jnp.float32)
    for q in range(1, n_q):
        acc = acc + jnp.dot(w_ref[q], x_ref[:, q:q + tl],
                            preferred_element_type=jnp.float32)
    y = acc + b_ref[...]                                 # bias + BN shift
    y = jnp.maximum(y, NEG_SLOPE * y)                    # LeakyReLU
    o_ref[...] = y.astype(o_ref.dtype)


def conv_bn_relu(x, weight, conv_bias, gamma, beta, run_mean, run_var,
                 stride, eps=1e-5):
    """x: (N, C_in, L) f32; weight: (C_out, C_in, ks). Returns (N, C_out, L_out)."""
    N, C_in, L = x.shape
    C_out, _, ks = weight.shape
    pad = (ks - 1) // 2
    L_out = (L + 2 * pad - ks) // stride + 1
    n_q = (ks - 1) // stride + 1        # number of output-shift groups
    q_max = n_q - 1                     # max tap shift in output positions

    # ---- L tiling: one tile if short, else 128-multiple lane-dense tiles ----
    MAX_TL = 2048
    if L_out <= MAX_TL:
        TL, T = L_out, 1
    else:
        TL = MAX_TL
        # keep double-buffered (input tile + output tile) comfortably in VMEM
        while TL > 128 and (stride * C_in + C_out) * (TL + q_max) * 4 * 2 > (8 << 20):
            TL //= 2
        T = pl.cdiv(L_out, TL)
    TLH = TL + q_max                    # tile width incl. conv-tap halo
    L_pad_out = T * TL

    # ---- fold BatchNorm (inference mode) into conv weight + bias ------------
    # TODO(synk): BatchNorm uses fixed running statistics (eval mode); training
    # batch statistics are not computed here.
    inv_std = 1.0 / jnp.sqrt(run_var + eps)
    scale = gamma * inv_std                                      # (C_out,)
    w_folded = weight * scale[:, None, None]                     # (C_out, C_in, ks)
    # group taps by output shift q = k // stride; zero-pad ks to n_q*stride
    w_p = jnp.pad(w_folded, ((0, 0), (0, 0), (0, n_q * stride - ks)))
    w_q = jnp.transpose(w_p.reshape(C_out, C_in, n_q, stride), (2, 0, 3, 1))
    w_q = w_q.reshape(n_q, C_out, stride * C_in)                 # (n_q, C_out, S*C_in)
    bias = ((conv_bias - run_mean) * scale + beta).reshape(C_out, 1)

    # ---- polyphase + tile gather (single ~1x pass, no ks-fold im2col) -------
    max_idx = (L_pad_out - 1 + q_max) * stride + (stride - 1)
    right_pad = max(max_idx + 1 - (L + pad), 0)
    x_p = jnp.pad(x, ((0, 0), (0, 0), (pad, right_pad)))         # (N, C_in, Lpp)
    pos = ((jnp.arange(T)[:, None, None] * TL
            + jnp.arange(TLH)[None, None, :]) * stride
           + jnp.arange(stride)[None, :, None])                  # (T, stride, TLH)
    g = x_p[:, :, pos]                                           # (N, C_in, T, stride, TLH)
    g = jnp.transpose(g, (0, 2, 3, 1, 4)).reshape(N, T, stride * C_in, TLH)

    kernel = functools.partial(_conv_bn_lrelu_kernel, n_q=n_q, tl=TL)
    out = pl.pallas_call(
        kernel,
        out_shape=jax.ShapeDtypeStruct((N, C_out, L_pad_out), x.dtype),
        grid=(N, T),
        in_specs=[
            pl.BlockSpec((None, None, stride * C_in, TLH),
                         lambda n, t: (n, t, 0, 0)),
            pl.BlockSpec((n_q, C_out, stride * C_in), lambda n, t: (0, 0, 0)),
            pl.BlockSpec((C_out, 1), lambda n, t: (0, 0)),
        ],
        out_specs=pl.BlockSpec((None, C_out, TL), lambda n, t: (n, 0, t)),
        compiler_params=pltpu.CompilerParams(
            dimension_semantics=("parallel", "parallel")),
    )(g, w_q, bias)

    if L_pad_out != L_out:
        out = out[:, :, :L_out]
    return out


def _reference(x, weight, conv_bias, gamma, beta, run_mean, run_var,
               stride, eps=1e-5):
    pad = (weight.shape[-1] - 1) // 2
    y = jax.lax.conv_general_dilated(
        x, weight, window_strides=(stride,), padding=[(pad, pad)],
        dimension_numbers=("NCH", "OIH", "NCH"))
    y = y + conv_bias[None, :, None]
    y = (y - run_mean[None, :, None]) / jnp.sqrt(run_var[None, :, None] + eps)
    y = y * gamma[None, :, None] + beta[None, :, None]
    return jnp.where(y >= 0, y, NEG_SLOPE * y)


if __name__ == "__main__":
    # Module hyperparameters: ConvBNReLU(nin=4, nout=8, stride=2, ks=3)
    nin, nout, stride, ks = 4, 8, 2, 3
    N, L = 2, 16

    key = jax.random.PRNGKey(0)
    kx, kw, kb, kg, kbt, km, kv = jax.random.split(key, 7)
    x = jax.random.normal(kx, (N, nin, L), jnp.float32)
    weight = 0.3 * jax.random.normal(kw, (nout, nin, ks), jnp.float32)
    conv_bias = 0.1 * jax.random.normal(kb, (nout,), jnp.float32)
    gamma = 1.0 + 0.1 * jax.random.normal(kg, (nout,), jnp.float32)
    beta = 0.1 * jax.random.normal(kbt, (nout,), jnp.float32)
    run_mean = 0.1 * jax.random.normal(km, (nout,), jnp.float32)
    run_var = jnp.abs(jax.random.normal(kv, (nout,), jnp.float32)) + 0.5

    out = conv_bn_relu(x, weight, conv_bias, gamma, beta, run_mean, run_var,
                       stride)
    out = jax.block_until_ready(out)

    ref = _reference(x, weight, conv_bias, gamma, beta, run_mean, run_var,
                     stride)
    assert out.shape == ref.shape, (out.shape, ref.shape)
    max_err = float(jnp.max(jnp.abs(out - ref)))
    assert jnp.allclose(out, ref, atol=1e-4, rtol=1e-4), max_err
    print("KERNEL_OK")
</pallas_src>

<mosaic_0001>
module attributes {stable_mosaic.version = 11 : i64} {
  func.func @_conv_bn_lrelu_kernel(%arg0: i32, %arg1: i32, %arg2: memref<1x1x8x9xf32, #tpu.memory_space<vmem>>, %arg3: memref<2x8x8xf32, #tpu.memory_space<vmem>>, %arg4: memref<8x1xf32, #tpu.memory_space<vmem>>, %arg5: memref<1x8x8xf32, #tpu.memory_space<vmem>>) attributes {dimension_semantics = [#tpu.dimension_semantics<parallel>, #tpu.dimension_semantics<parallel>], iteration_bounds = array<i64: 2, 1>, scalar_prefetch = 0 : i64, scratch_operands = 0 : i64, tpu.core_type = #tpu.core_type<tc>, window_params = [{transform_indices = @transform_0, window_bounds = array<i64: 1, 1, 8, 9>}, {pipeline_mode = #tpu.pipeline_mode<synchronous>, transform_indices = @transform_1, window_bounds = array<i64: 2, 8, 8>}, {pipeline_mode = #tpu.pipeline_mode<synchronous>, transform_indices = @transform_2, window_bounds = array<i64: 8, 1>}, {transform_indices = @transform_3, window_bounds = array<i64: 1, 8, 8>}]} {
    %c0 = arith.constant 0 : index
    %c0_0 = arith.constant 0 : index
    %c0_1 = arith.constant 0 : index
    %0 = vector.load %arg3[%c0, %c0_0, %c0_1] : memref<2x8x8xf32, #tpu.memory_space<vmem>>, vector<1x8x8xf32>
    %1 = vector.shape_cast %0 : vector<1x8x8xf32> to vector<8x8xf32>
    %c0_2 = arith.constant 0 : index
    %c0_3 = arith.constant 0 : index
    %c0_4 = arith.constant 0 : index
    %c0_5 = arith.constant 0 : index
    %2 = vector.load %arg2[%c0_2, %c0_3, %c0_4, %c0_5] : memref<1x1x8x9xf32, #tpu.memory_space<vmem>>, vector<1x1x8x8xf32>
    %3 = vector.shape_cast %2 : vector<1x1x8x8xf32> to vector<8x8xf32>
    %cst = arith.constant dense<0.000000e+00> : vector<8x8xf32>
    %4 = tpu.matmul %1, %3, %cst {dimension_numbers = #tpu.dot_dimension_numbers<[1], [0], [0], [1], [0, 0, 1, 1], [], []>} : vector<8x8xf32>, vector<8x8xf32>, vector<8x8xf32> -> vector<8x8xf32>
    %c1 = arith.constant 1 : index
    %c0_6 = arith.constant 0 : index
    %c0_7 = arith.constant 0 : index
    %5 = vector.load %arg3[%c1, %c0_6, %c0_7] : memref<2x8x8xf32, #tpu.memory_space<vmem>>, vector<1x8x8xf32>
    %6 = vector.shape_cast %5 : vector<1x8x8xf32> to vector<8x8xf32>
    %c0_8 = arith.constant 0 : index
    %c0_9 = arith.constant 0 : index
    %c0_10 = arith.constant 0 : index
    %c1_11 = arith.constant 1 : index
    %7 = vector.load %arg2[%c0_8, %c0_9, %c0_10, %c1_11] : memref<1x1x8x9xf32, #tpu.memory_space<vmem>>, vector<1x1x8x8xf32>
    %8 = vector.shape_cast %7 : vector<1x1x8x8xf32> to vector<8x8xf32>
    %cst_12 = arith.constant dense<0.000000e+00> : vector<8x8xf32>
    %9 = tpu.matmul %6, %8, %cst_12 {dimension_numbers = #tpu.dot_dimension_numbers<[1], [0], [0], [1], [0, 0, 1, 1], [], []>} : vector<8x8xf32>, vector<8x8xf32>, vector<8x8xf32> -> vector<8x8xf32>
    %10 = arith.addf %4, %9 : vector<8x8xf32>
    %c0_13 = arith.constant 0 : index
    %c0_14 = arith.constant 0 : index
    %11 = vector.load %arg4[%c0_13, %c0_14] : memref<8x1xf32, #tpu.memory_space<vmem>>, vector<8x1xf32>
    %12 = vector.broadcast %11 : vector<8x1xf32> to vector<8x8xf32>
    %13 = arith.addf %10, %12 : vector<8x8xf32>
    %cst_15 = arith.constant 0.00999999977 : f32
    %14 = vector.broadcast %cst_15 : f32 to vector<8x8xf32>
    %15 = arith.mulf %14, %13 : vector<8x8xf32>
    %16 = arith.maximumf %13, %15 : vector<8x8xf32>
    %c0_16 = arith.constant 0 : index
    %c0_17 = arith.constant 0 : index
    %c0_18 = arith.constant 0 : index
    %17 = vector.load %arg5[%c0_16, %c0_17, %c0_18] : memref<1x8x8xf32, #tpu.memory_space<vmem>>, vector<1x8x8xf32>
    %18 = vector.shape_cast %17 : vector<1x8x8xf32> to vector<8x8xf32>
    %19 = vector.shape_cast %16 : vector<8x8xf32> to vector<1x8x8xf32>
    tpu.vector_store %arg5[%c0_16, %c0_17, %c0_18], %19 {strides = array<i32>} : memref<1x8x8xf32, #tpu.memory_space<vmem>>, vector<1x8x8xf32>,
    return
  }
  func.func @transform_0(%arg0: i32, %arg1: i32) -> (i32, i32, i32, i32) {
    %c0_i32 = arith.constant 0 : i32
    %c0_i32_0 = arith.constant 0 : i32
    %c0_i32_1 = arith.constant 0 : i32
    return %arg0, %arg1, %c0_i32, %c0_i32_0 : i32, i32, i32, i32
  }
  func.func @transform_1(%arg0: i32, %arg1: i32) -> (i32, i32, i32) {
    %c0_i32 = arith.constant 0 : i32
    %c0_i32_0 = arith.constant 0 : i32
    %c0_i32_1 = arith.constant 0 : i32
    %c0_i32_2 = arith.constant 0 : i32
    return %c0_i32, %c0_i32_0, %c0_i32_1 : i32, i32, i32
  }
  func.func @transform_2(%arg0: i32, %arg1: i32) -> (i32, i32) {
    %c0_i32 = arith.constant 0 : i32
    %c0_i32_0 = arith.constant 0 : i32
    %c0_i32_1 = arith.constant 0 : i32
    return %c0_i32, %c0_i32_0 : i32, i32
  }
  func.func @transform_3(%arg0: i32, %arg1: i32) -> (i32, i32, i32) {
    %c0_i32 = arith.constant 0 : i32
    %c0_i32_0 = arith.constant 0 : i32
    return %arg0, %c0_i32, %arg1 : i32, i32, i32
  }
}

</mosaic_0001>

<llo_original>
// kernel: tpu_custom_call.1
$region0: #{tpu_custom_call.1}
  #allocation0 [shape = 'u32[]', space=smem, size = 0x4, offset = 0x4, fixed_abs, tag = 'smem constant byte address 0x4 - core index']
  #allocation1 [shape = 'u32[72,128]{1,0:T(1,128)}', space=vmem, size = 0x9000, scoped, tag = 'internal scratch']
  %s0 = inlined_call_operand.hbm [shape: f32[2,1,8,9], index: 0, kind: input, shape index: {}]
  %s1 = inlined_call_operand.hbm [shape: f32[2,8,8], index: 1, kind: input, shape index: {}]
  %s2 = inlined_call_operand.vmem [shape: f32[8,1], index: 2, kind: input, shape index: {}]
  %s3 = inlined_call_operand.hbm [shape: f32[2,8,8], index: 3, kind: output, shape index: {}]
  %s4 = sld [smem:[#allocation0]]
  $region53: #{tpu_custom_call.1} parent=0
    _
  %s6 = ssub.s32 1, %s4
  %s7 = scalar_select 0, %s6, %s4
  $region1: #{tpu_custom_call.1} parent=0
    #allocation2 [shape = 'u8[8192]{0}', space=vmem, size = 0x2000, scoped, tag = 'input window, operand 0']
    #allocation3 [shape = 's32[2]{0}', space=sflag, size = 0x8, scoped, tag = 'scoped memory for tpu_custom_call.1']
    #allocation4 [shape = 's32[2]{0}', space=sflag, size = 0x8, scoped, tag = 'scoped memory for tpu_custom_call.1']
    #allocation5 [shape = 'u8[8192]{0}', space=vmem, size = 0x2000, scoped, tag = 'input window, operand 1, single buffered']
    #allocation6 [shape = 's32[1]{0}', space=sflag, size = 0x4, scoped, tag = 'scoped memory for tpu_custom_call.1']
    #allocation7 [shape = 'u8[8192]{0}', space=vmem, size = 0x2000, scoped, tag = 'output window, operand 0']
    %8 = vsyncpa [#allocation3], 0
    %s9 = scalar_lea.sflag [#allocation3], 1
    %10 = vsyncpa %s9, 0
    %11 = vsyncpa [#allocation6], 0
    %12 = vsyncpa [#allocation4], 0
    %s13 = scalar_lea.sflag [#allocation4], 1
    %14 = vsyncpa %s13, 0
    loop: start=0, step=1, limit=4
    $region2: #{tpu_custom_call.1} parent=1 // loop_pre_header
      _
    $region3: #{tpu_custom_call.1} parent=1 // loop_header
      %s16 = sphi 0, %s20
      %p17 = scmp.ge.s32.totalorder %s16, 4
      %s23 = sphi 0, %s35
      %s24 = sphi 0, %s31
      %s25 = sphi 0, %s23
      %s26 = sphi 0, %s24
      %s27 = sphi 0, %s25
      %s28 = sphi 0, %s26
      %s40 = sphi 0, %s42
      %s43 = sphi 0, %s40
      %s44 = sphi 0, %s43
      %s60 = sphi 0, %s44
      %s64 = sphi 0, %s64
      %s66 = sphi 0, %s64
      %s67 = sphi 0, %s66
      %s81 = sphi 0, %s67
      %s85 = sphi 0, %s85
      %s87 = sphi 0, %s85
      %s88 = sphi 0, %s87
      %s102 = sphi 0, %s88
      %s110 = sphi 0, %s112
      %s113 = sphi 0, %s110
      %s114 = sphi 0, %s113
      %s130 = sphi 0, %s114
    $region4: #{tpu_custom_call.1} parent=1 // loop_header_branch
      %19 = sbr.rel (%p17) target = $region8
    $region5: #{tpu_custom_call.1} parent=1 // loop_body
      %s21 = ssub.s32 %s16, 1
      %s22 = ssub.s32 %s16, 2
      %s29 = sadd.s32 1, %s24
      %p30 = scmp.ge.s32.totalorder %s29, 1
      %s31 = scalar_select %p30, 0, %s29
      %s32 = sadd.s32 1, %s23
      %s33 = scalar_select %p30, %s32, %s23
      %p34 = scmp.ge.s32.totalorder %s33, 2
      %s35 = scalar_select %p34, 0, %s33
      %s36 = ssub.s32 %s23, %s35
      %s37 = ssub.s32 %s24, %s31
      %s38 = sor.u32 %s36, %s37
      %p39 = scmp.eq.s32.totalorder %s38, 0
      %s41 = sadd.s32 %s40, 1
      %s42 = scalar_select %p39, %s40, %s41
      %p45 = pneg %p39
      %p46 = scmp.eq.s32.totalorder %s16, 1
      %p47 = por %p45, %p46
      %p48 = scmp.ne.s32.totalorder %s40, %s43
      %p49 = scmp.eq.s32.totalorder %s16, 0
      %p50 = por %p48, %p49
      %p51 = scmp.ne.s32.totalorder %s40, %s43
      %p52 = scmp.eq.s32.totalorder %s21, 1
      %p53 = por %p51, %p52
      %p54 = scmp.ne.s32.totalorder %s43, %s44
      %p55 = scmp.eq.s32.totalorder %s21, 0
      %p56 = por %p54, %p55
      %p57 = scmp.ne.s32.totalorder %s43, %s44
      %p58 = scmp.eq.s32.totalorder %s22, 1
      %p59 = por %p57, %p58
      %p61 = scmp.ne.s32.totalorder %s44, %s60
      %p62 = scmp.eq.s32.totalorder %s22, 0
      %p63 = por %p61, %p62
      %s65 = sadd.s32 %s64, 1
      %p68 = scmp.eq.s32.totalorder %s16, 1
      %p69 = scmp.ne.s32.totalorder %s64, %s66
      %p70 = scmp.eq.s32.totalorder %s16, 0
      %p71 = por %p69, %p70
      %p72 = scmp.ne.s32.totalorder %s64, %s66
      %p73 = scmp.eq.s32.totalorder %s21, 1
      %p74 = por %p72, %p73
      %p75 = scmp.ne.s32.totalorder %s66, %s67
      %p76 = scmp.eq.s32.totalorder %s21, 0
      %p77 = por %p75, %p76
      %p78 = scmp.ne.s32.totalorder %s66, %s67
      %p79 = scmp.eq.s32.totalorder %s22, 1
      %p80 = por %p78, %p79
      %p82 = scmp.ne.s32.totalorder %s67, %s81
      %p83 = scmp.eq.s32.totalorder %s22, 0
      %p84 = por %p82, %p83
      %s86 = sadd.s32 %s85, 1
      %p89 = scmp.eq.s32.totalorder %s16, 1
      %p90 = scmp.ne.s32.totalorder %s85, %s87
      %p91 = scmp.eq.s32.totalorder %s16, 0
      %p92 = por %p90, %p91
      %p93 = scmp.ne.s32.totalorder %s85, %s87
      %p94 = scmp.eq.s32.totalorder %s21, 1
      %p95 = por %p93, %p94
      %p96 = scmp.ne.s32.totalorder %s87, %s88
      %p97 = scmp.eq.s32.totalorder %s21, 0
      %p98 = por %p96, %p97
      %p99 = scmp.ne.s32.totalorder %s87, %s88
      %p100 = scmp.eq.s32.totalorder %s22, 1
      %p101 = por %p99, %p100
      %p103 = scmp.ne.s32.totalorder %s88, %s102
      %p104 = scmp.eq.s32.totalorder %s22, 0
      %p105 = por %p103, %p104
      %s106 = ssub.s32 %s23, %s35
      %s107 = ssub.s32 %s24, %s31
      %s108 = sor.u32 %s106, %s107
      %p109 = scmp.eq.s32.totalorder %s108, 0
      %s111 = sadd.s32 %s110, 1
      %s112 = scalar_select %p109, %s110, %s111
      %p115 = pneg %p109
      %p116 = scmp.eq.s32.totalorder %s16, 1
      %p117 = por %p115, %p116
      %p118 = scmp.ne.s32.totalorder %s110, %s113
      %p119 = scmp.eq.s32.totalorder %s16, 0
      %p120 = por %p118, %p119
      %p121 = scmp.ne.s32.totalorder %s110, %s113
      %p122 = scmp.eq.s32.totalorder %s21, 1
      %p123 = por %p121, %p122
      %p124 = scmp.ne.s32.totalorder %s113, %s114
      %p125 = scmp.eq.s32.totalorder %s21, 0
      %p126 = por %p124, %p125
      %p127 = scmp.ne.s32.totalorder %s113, %s114
      %p128 = scmp.eq.s32.totalorder %s22, 1
      %p129 = por %p127, %p128
      %p131 = scmp.ne.s32.totalorder %s114, %s130
      %p132 = scmp.eq.s32.totalorder %s22, 0
      %p133 = por %p131, %p132
      %p134 = scmp.le.s32.totalorder 1, %s16
      %p135 = scmp.lt.s32.totalorder %s16, 3
      %p136 = pnand %p134, %p135
      %p137 = pneg %p136
      // Predicated region
      $region9: #{tpu_custom_call.1} parent=5 // pred_check
        _
      $region10: #{tpu_custom_call.1} parent=5 // pred_check_branch
        %139 = sbr.rel (%p136) target = $region12
      $region11: #{tpu_custom_call.1} parent=5 // pred_region
        %s140 = ssub.s32 %s16, 1
        // Predicated region
        $region13: #{tpu_custom_call.1} parent=11 // pred_check
          %p141 = pneg %p77
        $region14: #{tpu_custom_call.1} parent=11 // pred_check_branch
          %143 = sbr.rel (%p141) target = $region16
        $region15: #{tpu_custom_call.1} parent=11 // pred_region
          %145 = vsyncadd [#allocation6], 0
          %s146 = sshll.u32 %s1, 4
          %s147 = int_to_ptr.hbm [resolvable:$true] %s146
          %s148 = sshll.u32 [#allocation5], 4
          %s149 = int_to_ptr.vmem [resolvable:$true] %s148
          %154 = dma.hbm_to_vmem [thread:$0]  %s147, 256, %s149, [#allocation6], 128, 128, 8
        $region16: #{tpu_custom_call.1} parent=11 // pred_fallthru
          _
        // Predicated region
        $region17: #{tpu_custom_call.1} parent=11 // pred_check
          %p155 = pneg %p98
        $region18: #{tpu_custom_call.1} parent=11 // pred_check_branch
          %157 = sbr.rel (%p155) target = $region20
        $region19: #{tpu_custom_call.1} parent=11 // pred_region
          _
        $region20: #{tpu_custom_call.1} parent=11 // pred_fallthru
          _
      $region12: #{tpu_custom_call.1} parent=5 // pred_fallthru
        _
      %p158 = scmp.lt.s32.totalorder %s16, 2
      // Predicated region
      $region21: #{tpu_custom_call.1} parent=5 // pred_check
        %p159 = pneg %p158
      $region22: #{tpu_custom_call.1} parent=5 // pred_check_branch
        %161 = sbr.rel (%p159) target = $region24
      $region23: #{tpu_custom_call.1} parent=5 // pred_region
        // Predicated region
        $region25: #{tpu_custom_call.1} parent=23 // pred_check
          %p162 = pneg %p50
        $region26: #{tpu_custom_call.1} parent=23 // pred_check_branch
          %164 = sbr.rel (%p162) target = $region28
        $region27: #{tpu_custom_call.1} parent=23 // pred_region
          %s165 = sand.u32 %s40, 1
          %s166 = scalar_lea.sflag [#allocation3], %s165
          %s167 = sand.u32 %s40, 1
          %s168 = smul.addr %s167, 8
          %s169 = scalar_lea.vmem [#allocation2], %s168
          %171 = vsyncadd %s166, 0
          %s172 = sadd.s32 %s24, %s23
          %s173 = smul.addr %s172, 8
          %s174 = scalar_lea.hbm %s0, %s173
          %s176 = sshll.u32 %s174, 4
          %s177 = int_to_ptr.hbm [resolvable:$true] %s176
          %s178 = sshll.u32 %s169, 4
          %s179 = int_to_ptr.vmem [resolvable:$true] %s178
          %181 = dma.hbm_to_vmem [thread:$0]  %s177, 128, %s179, %s166
        $region28: #{tpu_custom_call.1} parent=23 // pred_fallthru
          _
      $region24: #{tpu_custom_call.1} parent=5 // pred_fallthru
        _
      %p182 = scmp.le.s32.totalorder 1, %s16
      %p183 = scmp.lt.s32.totalorder %s16, 3
      %p184 = pnand %p182, %p183
      %p185 = pneg %p184
      // Predicated region
      $region29: #{tpu_custom_call.1} parent=5 // pred_check
        _
      $region30: #{tpu_custom_call.1} parent=5 // pred_check_branch
        %187 = sbr.rel (%p184) target = $region32
      $region31: #{tpu_custom_call.1} parent=5 // pred_region
        %s188 = ssub.s32 %s16, 1
        %s189 = sand.u32 %s43, 1
        %s190 = scalar_lea.sflag [#allocation3], %s189
        %s191 = sand.u32 %s43, 1
        %s192 = smul.addr %s191, 8
        %s193 = scalar_lea.vmem [#allocation2], %s192
        // Predicated region
        $region33: #{tpu_custom_call.1} parent=31 // pred_check
          %p194 = pneg %p56
        $region34: #{tpu_custom_call.1} parent=31 // pred_check_branch
          %196 = sbr.rel (%p194) target = $region36
        $region35: #{tpu_custom_call.1} parent=31 // pred_region
          %198 = dma.done %s190, 128
        $region36: #{tpu_custom_call.1} parent=31 // pred_fallthru
          _
        // Predicated region
        $region37: #{tpu_custom_call.1} parent=31 // pred_check
          %p199 = pneg %p77
        $region38: #{tpu_custom_call.1} parent=31 // pred_check_branch
          %201 = sbr.rel (%p199) target = $region40
        $region39: #{tpu_custom_call.1} parent=31 // pred_region
          %203 = dma.done [#allocation6], 256
        $region40: #{tpu_custom_call.1} parent=31 // pred_fallthru
          _
        %s204 = sand.u32 %s43, 1
        %s205 = scalar_lea.sflag [#allocation3], %s204
        %s206 = sand.u32 %s43, 1
        %s207 = smul.addr %s206, 8
        %s208 = scalar_lea.vmem [#allocation2], %s207
        %p209 = pneg %p56
        %p210 = pneg %p53
        %p211 = pneg %p77
        %p212 = pneg %p74
        %p213 = pneg %p98
        %p214 = pneg %p95
        %p215 = pneg %p126
        %p216 = pneg %p123
        %s217 = sand.u32 %s113, 1
        %s218 = scalar_lea.sflag [#allocation4], %s217
        %s219 = sand.u32 %s113, 1
        %s220 = smul.addr %s219, 8
        %s221 = scalar_lea.vmem [#allocation7], %s220
        %v222 = vld [vmem:[#allocation5] sm:$0xff]
        %v223 = vld [vmem:[%s193] sm:$0xff]
        %s224 = scalar_lea.vmem [#allocation5], 8
        %v225 = vld [vmem:[%s224] sm:$0xff]
        %227 = vrot.lane.b32.xlu0 %v223, 127
        %v228 = vpop.permute.xlu0 %227
        %vm230 = vcmask 64512
        %v232 = vsel %vm230, %v225, 0
        %234 = vmatpush.msra.mxu0 0.0
        %235 = vmatpush.msra.mxu0 0.0
        %236 = vmatpush.msra.mxu0 0.0
        %237 = vmatpush.msra.mxu0 0.0
        %238 = vmatpush.msra.mxu0 0.0
        %239 = vmatpush.msra.mxu0 0.0
        %240 = vmatpush.msra.mxu0 0.0
        %241 = vmatpush.msra.mxu0 0.0
        %242 = vmatpush.msra.mxu0 0.0
        %243 = vmatpush.msra.mxu0 0.0
        %244 = vmatpush.msra.mxu0 0.0
        %245 = vmatpush.msra.mxu0 0.0
        %246 = vmatpush.msra.mxu0 0.0
        %247 = vmatpush.msra.mxu0 0.0
        %248 = vmatpush.msra.mxu0 0.0
        %249 = vmatpush.msra.mxu0 %v228
        %250 = vmatmul.f32.gmra.mxu0 %v232
        %v251 = vpop.f32.mrf.mxu0
        %v252 = vadd.f32 0.0, %v251
        %253 = vdwg.mxu0
        %v255 = vsel %vm230, %v222, 0
        %257 = vmatpush.msra.mxu0 0.0
        %258 = vmatpush.msra.mxu0 0.0
        %259 = vmatpush.msra.mxu0 0.0
        %260 = vmatpush.msra.mxu0 0.0
        %261 = vmatpush.msra.mxu0 0.0
        %262 = vmatpush.msra.mxu0 0.0
        %263 = vmatpush.msra.mxu0 0.0
        %264 = vmatpush.msra.mxu0 0.0
        %265 = vmatpush.msra.mxu0 0.0
        %266 = vmatpush.msra.mxu0 0.0
        %267 = vmatpush.msra.mxu0 0.0
        %268 = vmatpush.msra.mxu0 0.0
        %269 = vmatpush.msra.mxu0 0.0
        %270 = vmatpush.msra.mxu0 0.0
        %271 = vmatpush.msra.mxu0 0.0
        %272 = vmatpush.msra.mxu0 %v223
        %273 = vmatmul.f32.gmra.mxu0 %v255
        %v274 = vpop.f32.mrf.mxu0
        %v275 = vadd.f32 %v252, %v274
        %276 = vdwg.mxu0
        %v277 = vld [vmem:[%s2] sm:$0xff]
        %279 = vset.pattern.permute.xlu0 0
        %280 = vperm.xlu0 %279, %v277
        %v281 = vpop.permute.xlu0 %280
        %v283 = vadd.f32 %v275, %v281
        %v284 = vmul.f32 %v283, 0.01
        %v285 = vmax.f32 %v283, %v284
        %286 = vst.msk [vmem:[%s221] sm:$0xff] %vm230, %v285
        %s287 = sand.u32 %s113, 1
        %s288 = scalar_lea.sflag [#allocation4], %s287
        %s289 = sand.u32 %s113, 1
        %s290 = smul.addr %s289, 8
        %s291 = scalar_lea.vmem [#allocation7], %s290
        // Predicated region
        $region41: #{tpu_custom_call.1} parent=31 // pred_check
          %p292 = pneg %p123
        $region42: #{tpu_custom_call.1} parent=31 // pred_check_branch
          %294 = sbr.rel (%p292) target = $region44
        $region43: #{tpu_custom_call.1} parent=31 // pred_region
          %296 = vsyncadd %s288, 0
          %s297 = sadd.s32 %s26, %s25
          %s298 = smul.addr %s297, 8
          %s299 = scalar_lea.hbm %s3, %s298
          %s301 = sshll.u32 %s291, 4
          %s302 = int_to_ptr.vmem [resolvable:$true] %s301
          %s303 = sshll.u32 %s299, 4
          %s304 = int_to_ptr.hbm [resolvable:$true] %s303
          %306 = dma.vmem_to_hbm [thread:$0]  %s302, 128, %s304, %s288
        $region44: #{tpu_custom_call.1} parent=31 // pred_fallthru
          _
      $region32: #{tpu_custom_call.1} parent=5 // pred_fallthru
        _
      %p307 = scmp.le.s32.totalorder 2, %s16
      // Predicated region
      $region45: #{tpu_custom_call.1} parent=5 // pred_check
        %p308 = pneg %p307
      $region46: #{tpu_custom_call.1} parent=5 // pred_check_branch
        %310 = sbr.rel (%p308) target = $region48
      $region47: #{tpu_custom_call.1} parent=5 // pred_region
        %s311 = ssub.s32 %s16, 2
        // Predicated region
        $region49: #{tpu_custom_call.1} parent=47 // pred_check
          %p312 = pneg %p129
        $region50: #{tpu_custom_call.1} parent=47 // pred_check_branch
          %314 = sbr.rel (%p312) target = $region52
        $region51: #{tpu_custom_call.1} parent=47 // pred_region
          %s315 = sand.u32 %s114, 1
          %s316 = scalar_lea.sflag [#allocation4], %s315
          %s317 = sand.u32 %s114, 1
          %s318 = smul.addr %s317, 8
          %s319 = scalar_lea.vmem [#allocation7], %s318
          %321 = dma.done %s316, 128
        $region52: #{tpu_custom_call.1} parent=47 // pred_fallthru
          _
      $region48: #{tpu_custom_call.1} parent=5 // pred_fallthru
        _
    $region6: #{tpu_custom_call.1} parent=1 // loop_footer
      %s20 = sadd.s32 1, %s16
    $region7: #{tpu_custom_call.1} parent=1 // loop_footer_branch
      %15 = sbr.rel target = $region3
    $region8: #{tpu_custom_call.1} parent=1 // loop_exit
      _
    %322 = vsyncpa [#allocation3], 1
    %s323 = scalar_lea.sflag [#allocation3], 1
    %324 = vsyncpa %s323, 1
    %325 = vsyncpa [#allocation6], 1
    %326 = vsyncpa [#allocation4], 1
    %s327 = scalar_lea.sflag [#allocation4], 1
    %328 = vsyncpa %s327, 1

</llo_original>
